<compile_context>
chip_gen: v7x
topology: tpu7x:2x2x1
jax: 0.10.0
libtpu: 0.0.40
codegen_flags: <defaults>
</compile_context>

<pallas_src>
import numpy as np
import jax
import jax.numpy as jnp
from jax.experimental import pallas as pl
from jax.experimental.pallas import tpu as pltpu


def _round_up(x, m):
    return -(-x // m) * m


def _affine(x, w):
    """x: (TB, K) activations, w: (K, H) weights -> (TB, H).
    MXU matmul for K >= 8; unrolled rank-1 VPU updates for tiny K."""
    K = x.shape[1]
    if K >= 8:
        return jnp.dot(x, w, preferred_element_type=jnp.float32)
    acc = x[:, 0:1] * w[0:1, :]
    for k in range(1, K):
        acc = acc + x[:, k:k + 1] * w[k:k + 1, :]
    return acc


def qfunc_kernel(p_ref, w_ref, params_ref, o_ref):
    # p_ref: (TB, P), w_ref: (TB, Wn), params_ref: (S, H), o_ref: (TB, 1)
    P = p_ref.shape[1]
    Wn = w_ref.shape[1]
    w1p = params_ref[0:P, :]                       # (P, H)  2*W1[:, p cols].T
    w1w = params_ref[P:P + Wn, :]                  # (Wn, H) 2*W1[:, w cols].T
    b1 = params_ref[P + Wn:P + Wn + 1, :]          # (1, H)  b1 - W1.sum(in)
    w2 = params_ref[P + Wn + 1:P + Wn + 2, :]      # (1, H)
    b2 = params_ref[P + Wn + 2:P + Wn + 3, 0:1]    # (1, 1)

    h = jnp.tanh(_affine(p_ref[...], w1p) + _affine(w_ref[...], w1w) + b1)
    # Second layer: VPU multiply with a lane-dense (1, H) row + XLU lane reduce.
    o_ref[...] = jnp.sum(h * w2, axis=-1, keepdims=True) + b2


def make_qfunc_params(w1, b1, w2, b2, p_shape):
    """One-time parameter prep.  PyTorch Linear layout in: w1 (H, N), b1 (H,),
    w2 (1, H), b2 (1,), with N = rows*(cols+1) and p of shape (rows, cols),
    w of shape (rows,).  Returns a single (S, H) f32 slab (see module docstring
    for the row layout), zero-padded to a multiple of 8 rows."""
    rows, cols = p_shape
    H, N = int(w1.shape[0]), int(w1.shape[1])
    assert N == rows * (cols + 1), (N, rows, cols)

    w1 = jnp.asarray(w1, jnp.float32)
    b1 = jnp.asarray(b1, jnp.float32)
    w2 = jnp.asarray(w2, jnp.float32)
    b2 = jnp.asarray(b2, jnp.float32)

    # Column permutation of W1 matching z = cat([p, w[...,None]], -1).reshape(-1)
    idx = np.arange(N).reshape(rows, cols + 1)
    idx_p = idx[:, :cols].reshape(-1)   # columns multiplying p.reshape(-1)
    idx_w = idx[:, cols]                # columns multiplying w

    w1p = 2.0 * w1[:, idx_p].T                                  # (P, H)
    w1w = 2.0 * w1[:, idx_w].T                                  # (Wn, H)
    b1_eff = (b1 - jnp.sum(w1, axis=1)).reshape(1, H)           # z*2-1 folded
    w2_row = w2.reshape(1, H)
    b2_row = jnp.broadcast_to(b2.reshape(1, 1), (1, H))

    slab = jnp.concatenate([w1p, w1w, b1_eff, w2_row, b2_row], axis=0)
    S = slab.shape[0]
    S_pad = _round_up(S, 8)
    if S_pad != S:
        slab = jnp.pad(slab, ((0, S_pad - S), (0, 0)))
    return slab


def _qfunc_pallas(p_flat, w2d, params_slab):
    """p_flat: (B, P) f32, w2d: (B, Wn) f32, params_slab: (S, H) f32.
    Returns (Bp, 1) f32 with Bp = B rounded up to the row-block size."""
    B, P = p_flat.shape
    _, Wn = w2d.shape
    S, H = params_slab.shape

    TB = min(512, _round_up(B, 8))        # pipelining sweet spot when B grows
    Bp = _round_up(B, TB)
    if Bp != B:
        p_flat = jnp.pad(p_flat, ((0, Bp - B), (0, 0)))
        w2d = jnp.pad(w2d, ((0, Bp - B), (0, 0)))
    nb = Bp // TB

    cost = pl.CostEstimate(
        flops=2 * Bp * (P + Wn) * H + 3 * Bp * H,
        transcendentals=Bp * H,
        bytes_accessed=4 * (Bp * (P + Wn) + S * H + Bp),
    )

    return pl.pallas_call(
        qfunc_kernel,
        out_shape=jax.ShapeDtypeStruct((Bp, 1), jnp.float32),
        grid=(nb,),
        in_specs=[
            pl.BlockSpec((TB, P), lambda i: (i, 0)),     # activation rows
            pl.BlockSpec((TB, Wn), lambda i: (i, 0)),    # w rows
            pl.BlockSpec((S, H), lambda i: (0, 0)),      # VMEM-resident params
        ],
        out_specs=pl.BlockSpec((TB, 1), lambda i: (i, 0)),
        compiler_params=pltpu.CompilerParams(
            dimension_semantics=("parallel",)),
        cost_estimate=cost,
    )(p_flat, w2d, params_slab)


@jax.jit
def qfunc_forward(p, w, params_slab):
    """Exact module semantics: single sample, returns shape (1,)."""
    p_flat = p.reshape(1, -1)
    w_row = w.reshape(1, -1)
    return _qfunc_pallas(p_flat, w_row, params_slab)[0]


@jax.jit
def qfunc_forward_batched(p_batch, w_batch, params_slab):
    """Evaluate QFunc on B stacked samples in one launch.
    p_batch: (B, rows, cols), w_batch: (B, rows). Returns (B,)."""
    B = p_batch.shape[0]
    p_flat = p_batch.reshape(B, -1)       # free metadata reshape (row-major)
    w2d = w_batch.reshape(B, -1)
    out = _qfunc_pallas(p_flat, w2d, params_slab)
    return out[:B, 0]


def qfunc_reference(p, w, w1, b1, w2, b2):
    z = jnp.concatenate([p, w[..., None]], axis=-1).reshape(-1)
    z = z * 2.0 - 1.0
    h = jnp.tanh(z @ w1.T + b1)
    return h @ w2.T + b2


def qfunc_reference_batched(p_b, w_b, w1, b1, w2, b2):
    B = p_b.shape[0]
    z = jnp.concatenate([p_b, w_b[..., None]], axis=-1).reshape(B, -1)
    z = z * 2.0 - 1.0
    h = jnp.tanh(z @ w1.T + b1)
    return (h @ w2.T + b2)[:, 0]


if __name__ == "__main__":
    key = jax.random.PRNGKey(0)
    k_p, k_w, k_w1, k_b1, k_w2, k_b2, k_pb, k_wb, k_pl, k_wl = jax.random.split(key, 10)

    # Single sample: p (2, 3), w (2,) -> cat -> (2, 4) -> flat num_latents = 8
    rows, cols = 2, 3
    p = jax.random.uniform(k_p, (rows, cols), dtype=jnp.float32)
    w = jax.random.uniform(k_w, (rows,), dtype=jnp.float32)

    num_latents = rows * (cols + 1)   # 8
    hidden = 32

    # PyTorch Linear layout: (out, in)
    w1 = jax.random.normal(k_w1, (hidden, num_latents), dtype=jnp.float32) * 0.1
    b1 = jax.random.normal(k_b1, (hidden,), dtype=jnp.float32) * 0.1
    w2 = jax.random.normal(k_w2, (1, hidden), dtype=jnp.float32) * 0.1
    b2 = jax.random.normal(k_b2, (1,), dtype=jnp.float32) * 0.1

    params_slab = make_qfunc_params(w1, b1, w2, b2, p_shape=(rows, cols))

    # --- single-sample path (exact module semantics) ---
    out = jax.block_until_ready(qfunc_forward(p, w, params_slab))
    ref = qfunc_reference(p, w, w1, b1, w2, b2)
    assert out.shape == (1,)
    assert jnp.allclose(out, ref, atol=1e-5, rtol=1e-5), (out, ref)

    # --- small batched path (single grid step) ---
    B = 8
    p_batch = jax.random.uniform(k_pb, (B, rows, cols), dtype=jnp.float32)
    w_batch = jax.random.uniform(k_wb, (B, rows), dtype=jnp.float32)
    out_b = jax.block_until_ready(qfunc_forward_batched(p_batch, w_batch, params_slab))
    ref_b = qfunc_reference_batched(p_batch, w_batch, w1, b1, w2, b2)
    assert out_b.shape == (B,)
    assert jnp.allclose(out_b, ref_b, atol=2e-5, rtol=1e-5), (out_b, ref_b)

    # --- larger batch: exercises the pipelined batch grid (2 blocks) + padding ---
    BL = 600
    p_large = jax.random.uniform(k_pl, (BL, rows, cols), dtype=jnp.float32)
    w_large = jax.random.uniform(k_wl, (BL, rows), dtype=jnp.float32)
    out_l = jax.block_until_ready(qfunc_forward_batched(p_large, w_large, params_slab))
    ref_l = qfunc_reference_batched(p_large, w_large, w1, b1, w2, b2)
    assert out_l.shape == (BL,)
    assert jnp.allclose(out_l, ref_l, atol=5e-5, rtol=1e-5), (
        jnp.max(jnp.abs(out_l - ref_l)))

    print("KERNEL_OK")
</pallas_src>

<mosaic_0001>
module attributes {stable_mosaic.version = 11 : i64} {
  func.func @qfunc_kernel(%arg0: i32, %arg1: memref<8x6xf32, #tpu.memory_space<vmem>>, %arg2: memref<8x2xf32, #tpu.memory_space<vmem>>, %arg3: memref<16x32xf32, #tpu.memory_space<vmem>>, %arg4: memref<8x1xf32, #tpu.memory_space<vmem>>) attributes {dimension_semantics = [#tpu.dimension_semantics<parallel>], iteration_bounds = array<i64: 1>, scalar_prefetch = 0 : i64, scratch_operands = 0 : i64, tpu.core_type = #tpu.core_type<tc>, window_params = [{transform_indices = @transform_0, window_bounds = array<i64: 8, 6>}, {transform_indices = @transform_1, window_bounds = array<i64: 8, 2>}, {pipeline_mode = #tpu.pipeline_mode<synchronous>, transform_indices = @transform_2, window_bounds = array<i64: 16, 32>}, {transform_indices = @transform_3, window_bounds = array<i64: 8, 1>}]} {
    %c0 = arith.constant 0 : index
    %c0_0 = arith.constant 0 : index
    %0 = vector.load %arg3[%c0, %c0_0] : memref<16x32xf32, #tpu.memory_space<vmem>>, vector<6x32xf32>
    %c6 = arith.constant 6 : index
    %c0_1 = arith.constant 0 : index
    %1 = vector.load %arg3[%c6, %c0_1] : memref<16x32xf32, #tpu.memory_space<vmem>>, vector<2x32xf32>
    %c8 = arith.constant 8 : index
    %c0_2 = arith.constant 0 : index
    %2 = vector.load %arg3[%c8, %c0_2] : memref<16x32xf32, #tpu.memory_space<vmem>>, vector<1x32xf32>
    %c9 = arith.constant 9 : index
    %c0_3 = arith.constant 0 : index
    %3 = vector.load %arg3[%c9, %c0_3] : memref<16x32xf32, #tpu.memory_space<vmem>>, vector<1x32xf32>
    %c10 = arith.constant 10 : index
    %c0_4 = arith.constant 0 : index
    %4 = vector.load %arg3[%c10, %c0_4] : memref<16x32xf32, #tpu.memory_space<vmem>>, vector<1x1xf32>
    %c0_5 = arith.constant 0 : index
    %c0_6 = arith.constant 0 : index
    %5 = vector.load %arg1[%c0_5, %c0_6] : memref<8x6xf32, #tpu.memory_space<vmem>>, vector<8x6xf32>
    %6 = vector.extract_strided_slice %5 {offsets = [0, 0], sizes = [8, 1], strides = [1, 1]} : vector<8x6xf32> to vector<8x1xf32>
    %7 = vector.extract_strided_slice %0 {offsets = [0, 0], sizes = [1, 32], strides = [1, 1]} : vector<6x32xf32> to vector<1x32xf32>
    %8 = vector.broadcast %6 : vector<8x1xf32> to vector<8x32xf32>
    %9 = vector.broadcast %7 : vector<1x32xf32> to vector<8x32xf32>
    %10 = arith.mulf %8, %9 : vector<8x32xf32>
    %11 = vector.extract_strided_slice %5 {offsets = [0, 1], sizes = [8, 1], strides = [1, 1]} : vector<8x6xf32> to vector<8x1xf32>
    %12 = vector.extract_strided_slice %0 {offsets = [1, 0], sizes = [1, 32], strides = [1, 1]} : vector<6x32xf32> to vector<1x32xf32>
    %13 = vector.broadcast %11 : vector<8x1xf32> to vector<8x32xf32>
    %14 = vector.broadcast %12 : vector<1x32xf32> to vector<8x32xf32>
    %15 = arith.mulf %13, %14 : vector<8x32xf32>
    %16 = arith.addf %10, %15 : vector<8x32xf32>
    %17 = vector.extract_strided_slice %5 {offsets = [0, 2], sizes = [8, 1], strides = [1, 1]} : vector<8x6xf32> to vector<8x1xf32>
    %18 = vector.extract_strided_slice %0 {offsets = [2, 0], sizes = [1, 32], strides = [1, 1]} : vector<6x32xf32> to vector<1x32xf32>
    %19 = vector.broadcast %17 : vector<8x1xf32> to vector<8x32xf32>
    %20 = vector.broadcast %18 : vector<1x32xf32> to vector<8x32xf32>
    %21 = arith.mulf %19, %20 : vector<8x32xf32>
    %22 = arith.addf %16, %21 : vector<8x32xf32>
    %23 = vector.extract_strided_slice %5 {offsets = [0, 3], sizes = [8, 1], strides = [1, 1]} : vector<8x6xf32> to vector<8x1xf32>
    %24 = vector.extract_strided_slice %0 {offsets = [3, 0], sizes = [1, 32], strides = [1, 1]} : vector<6x32xf32> to vector<1x32xf32>
    %25 = vector.broadcast %23 : vector<8x1xf32> to vector<8x32xf32>
    %26 = vector.broadcast %24 : vector<1x32xf32> to vector<8x32xf32>
    %27 = arith.mulf %25, %26 : vector<8x32xf32>
    %28 = arith.addf %22, %27 : vector<8x32xf32>
    %29 = vector.extract_strided_slice %5 {offsets = [0, 4], sizes = [8, 1], strides = [1, 1]} : vector<8x6xf32> to vector<8x1xf32>
    %30 = vector.extract_strided_slice %0 {offsets = [4, 0], sizes = [1, 32], strides = [1, 1]} : vector<6x32xf32> to vector<1x32xf32>
    %31 = vector.broadcast %29 : vector<8x1xf32> to vector<8x32xf32>
    %32 = vector.broadcast %30 : vector<1x32xf32> to vector<8x32xf32>
    %33 = arith.mulf %31, %32 : vector<8x32xf32>
    %34 = arith.addf %28, %33 : vector<8x32xf32>
    %35 = vector.extract_strided_slice %5 {offsets = [0, 5], sizes = [8, 1], strides = [1, 1]} : vector<8x6xf32> to vector<8x1xf32>
    %36 = vector.extract_strided_slice %0 {offsets = [5, 0], sizes = [1, 32], strides = [1, 1]} : vector<6x32xf32> to vector<1x32xf32>
    %37 = vector.broadcast %35 : vector<8x1xf32> to vector<8x32xf32>
    %38 = vector.broadcast %36 : vector<1x32xf32> to vector<8x32xf32>
    %39 = arith.mulf %37, %38 : vector<8x32xf32>
    %40 = arith.addf %34, %39 : vector<8x32xf32>
    %c0_7 = arith.constant 0 : index
    %c0_8 = arith.constant 0 : index
    %41 = vector.load %arg2[%c0_7, %c0_8] : memref<8x2xf32, #tpu.memory_space<vmem>>, vector<8x2xf32>
    %42 = vector.extract_strided_slice %41 {offsets = [0, 0], sizes = [8, 1], strides = [1, 1]} : vector<8x2xf32> to vector<8x1xf32>
    %43 = vector.extract_strided_slice %1 {offsets = [0, 0], sizes = [1, 32], strides = [1, 1]} : vector<2x32xf32> to vector<1x32xf32>
    %44 = vector.broadcast %42 : vector<8x1xf32> to vector<8x32xf32>
    %45 = vector.broadcast %43 : vector<1x32xf32> to vector<8x32xf32>
    %46 = arith.mulf %44, %45 : vector<8x32xf32>
    %47 = vector.extract_strided_slice %41 {offsets = [0, 1], sizes = [8, 1], strides = [1, 1]} : vector<8x2xf32> to vector<8x1xf32>
    %48 = vector.extract_strided_slice %1 {offsets = [1, 0], sizes = [1, 32], strides = [1, 1]} : vector<2x32xf32> to vector<1x32xf32>
    %49 = vector.broadcast %47 : vector<8x1xf32> to vector<8x32xf32>
    %50 = vector.broadcast %48 : vector<1x32xf32> to vector<8x32xf32>
    %51 = arith.mulf %49, %50 : vector<8x32xf32>
    %52 = arith.addf %46, %51 : vector<8x32xf32>
    %53 = arith.addf %40, %52 : vector<8x32xf32>
    %54 = vector.broadcast %2 : vector<1x32xf32> to vector<8x32xf32>
    %55 = arith.addf %53, %54 : vector<8x32xf32>
    %56 = math.tanh %55 : vector<8x32xf32>
    %57 = vector.broadcast %3 : vector<1x32xf32> to vector<8x32xf32>
    %58 = arith.mulf %56, %57 : vector<8x32xf32>
    %cst = arith.constant dense<0.000000e+00> : vector<8xf32>
    %59 = vector.multi_reduction <add>, %58, %cst [1] : vector<8x32xf32> to vector<8xf32>
    %60 = vector.shape_cast %59 : vector<8xf32> to vector<8x1xf32>
    %61 = vector.broadcast %4 : vector<1x1xf32> to vector<8x1xf32>
    %62 = arith.addf %60, %61 : vector<8x1xf32>
    %c0_9 = arith.constant 0 : index
    %c0_10 = arith.constant 0 : index
    %63 = vector.load %arg4[%c0_9, %c0_10] : memref<8x1xf32, #tpu.memory_space<vmem>>, vector<8x1xf32>
    tpu.vector_store %arg4[%c0_9, %c0_10], %62 {strides = array<i32>} : memref<8x1xf32, #tpu.memory_space<vmem>>, vector<8x1xf32>,
    return
  }
  func.func @transform_0(%arg0: i32) -> (i32, i32) {
    %c0_i32 = arith.constant 0 : i32
    %c0_i32_0 = arith.constant 0 : i32
    return %arg0, %c0_i32 : i32, i32
  }
  func.func @transform_1(%arg0: i32) -> (i32, i32) {
    %c0_i32 = arith.constant 0 : i32
    %c0_i32_0 = arith.constant 0 : i32
    return %arg0, %c0_i32 : i32, i32
  }
  func.func @transform_2(%arg0: i32) -> (i32, i32) {
    %c0_i32 = arith.constant 0 : i32
    %c0_i32_0 = arith.constant 0 : i32
    %c0_i32_1 = arith.constant 0 : i32
    return %c0_i32, %c0_i32_0 : i32, i32
  }
  func.func @transform_3(%arg0: i32) -> (i32, i32) {
    %c0_i32 = arith.constant 0 : i32
    %c0_i32_0 = arith.constant 0 : i32
    return %arg0, %c0_i32 : i32, i32
  }
}

</mosaic_0001>

<llo_original>
// kernel: qfunc_forward.1
$region0: #{qfunc_forward.1}
  #allocation0 [shape = 'u32[]', space=smem, size = 0x4, offset = 0x4, fixed_abs, tag = 'smem constant byte address 0x4 - core index']
  #allocation1 [shape = 'u32[144,128]{1,0:T(1,128)}', space=vmem, size = 0x12000, scoped, tag = 'internal scratch']
  %s0 = inlined_call_operand.vmem [shape: f32[8,6], index: 0, kind: input, shape index: {}]
  %s1 = inlined_call_operand.vmem [shape: f32[8,2], index: 1, kind: input, shape index: {}]
  %s2 = inlined_call_operand.vmem [shape: f32[16,32], index: 2, kind: input, shape index: {}]
  %s3 = inlined_call_operand.vmem [shape: f32[8,1], index: 3, kind: output, shape index: {}]
  %s4 = sld [smem:[#allocation0]]
  $region22: #{qfunc_forward.1} parent=0
    _
  %s6 = ssub.s32 1, %s4
  %s7 = scalar_select 0, %s6, %s4
  // Predicated region
  $region2: #{qfunc_forward.1} parent=0 // pred_check
    _
  $region3: #{qfunc_forward.1} parent=0 // pred_check_branch
    %9 = sbr.rel (0) target = $region5
  $region4: #{qfunc_forward.1} parent=0 // pred_region
    _
  $region5: #{qfunc_forward.1} parent=0 // pred_fallthru
    _
  // Predicated region
  $region6: #{qfunc_forward.1} parent=0 // pred_check
    _
  $region7: #{qfunc_forward.1} parent=0 // pred_check_branch
    %11 = sbr.rel (0) target = $region9
  $region8: #{qfunc_forward.1} parent=0 // pred_region
    _
  $region9: #{qfunc_forward.1} parent=0 // pred_fallthru
    _
  // Predicated region
  $region10: #{qfunc_forward.1} parent=0 // pred_check
    _
  $region11: #{qfunc_forward.1} parent=0 // pred_check_branch
    %13 = sbr.rel (0) target = $region13
  $region12: #{qfunc_forward.1} parent=0 // pred_region
    _
  $region13: #{qfunc_forward.1} parent=0 // pred_fallthru
    _
  %v14 = vld [vmem:[%s2] sm:$0x3f]
  %v15 = vld [vmem:[%s2 + $0x6] sm:$0x3]
  %v16 = vld [vmem:[%s2 + $0x8] sm:$0x1]
  %v17 = vld [vmem:[%s2 + $0x9] sm:$0x1]
  %v18 = vld [vmem:[%s2 + $0xa] sm:$0x1]
  %v19 = vld [vmem:[%s0] sm:$0xff]
  %21 = vset.pattern.permute.xlu0 0
  %22 = vperm.xlu0 %21, %v19
  %v23 = vpop.permute.xlu0 %22
  %v25 = vlaneseq
  %v26 = vshrl.u32 %v25, 7
  %v27 = vsub.s32 0, %v26
  %v28 = vrot.slane %v14, %v27
  %v29 = vmul.f32 %v23, %v28
  %30 = vset.pattern.permute.xlu0 1
  %31 = vperm.xlu0 %30, %v19
  %v32 = vpop.permute.xlu0 %31
  %v34 = vlaneseq
  %v35 = vshrl.u32 %v34, 7
  %v36 = vsub.s32 1, %v35
  %v37 = vrot.slane %v14, %v36
  %v38 = vmul.f32 %v32, %v37
  %v39 = vadd.f32 %v29, %v38
  %40 = vset.pattern.permute.xlu0 2
  %41 = vperm.xlu0 %40, %v19
  %v42 = vpop.permute.xlu0 %41
  %v44 = vlaneseq
  %v45 = vshrl.u32 %v44, 7
  %v46 = vsub.s32 2, %v45
  %v47 = vrot.slane %v14, %v46
  %v48 = vmul.f32 %v42, %v47
  %v49 = vadd.f32 %v39, %v48
  %50 = vset.pattern.permute.xlu0 3
  %51 = vperm.xlu0 %50, %v19
  %v52 = vpop.permute.xlu0 %51
  %v54 = vlaneseq
  %v55 = vshrl.u32 %v54, 7
  %v56 = vsub.s32 3, %v55
  %v57 = vrot.slane %v14, %v56
  %v58 = vmul.f32 %v52, %v57
  %v59 = vadd.f32 %v49, %v58
  %60 = vset.pattern.permute.xlu0 4
  %61 = vperm.xlu0 %60, %v19
  %v62 = vpop.permute.xlu0 %61
  %v64 = vlaneseq
  %v65 = vshrl.u32 %v64, 7
  %v66 = vsub.s32 4, %v65
  %v67 = vrot.slane %v14, %v66
  %v68 = vmul.f32 %v62, %v67
  %v69 = vadd.f32 %v59, %v68
  %70 = vset.pattern.permute.xlu0 5
  %71 = vperm.xlu0 %70, %v19
  %v72 = vpop.permute.xlu0 %71
  %v74 = vlaneseq
  %v75 = vshrl.u32 %v74, 7
  %v76 = vsub.s32 5, %v75
  %v77 = vrot.slane %v14, %v76
  %v78 = vmul.f32 %v72, %v77
  %v79 = vadd.f32 %v69, %v78
  %v80 = vld [vmem:[%s1] sm:$0xff]
  %82 = vset.pattern.permute.xlu0 0
  %83 = vperm.xlu0 %82, %v80
  %v84 = vpop.permute.xlu0 %83
  %v86 = vlaneseq
  %v87 = vshrl.u32 %v86, 7
  %v88 = vsub.s32 0, %v87
  %v89 = vrot.slane %v15, %v88
  %v90 = vmul.f32 %v84, %v89
  %91 = vset.pattern.permute.xlu0 1
  %92 = vperm.xlu0 %91, %v80
  %v93 = vpop.permute.xlu0 %92
  %v95 = vlaneseq
  %v96 = vshrl.u32 %v95, 7
  %v97 = vsub.s32 1, %v96
  %v98 = vrot.slane %v15, %v97
  %v99 = vmul.f32 %v93, %v98
  %v100 = vadd.f32 %v90, %v99
  %v101 = vadd.f32 %v79, %v100
  %v102 = vlaneseq
  %v103 = vshrl.u32 %v102, 7
  %v104 = vsub.s32 0, %v103
  %v105 = vrot.slane %v16, %v104
  %v106 = vadd.f32 %v101, %v105
  %v107 = vtanh.pop %v106
  %v108 = vlaneseq
  %v109 = vshrl.u32 %v108, 7
  %v110 = vsub.s32 0, %v109
  %v111 = vrot.slane %v17, %v110
  %v112 = vmul.f32 %v107, %v111
  %vm113 = vcmask 261120
  %v114 = vsel %vm113, %v112, 0.0
  %115 = vadd.xlane.f32.xlu0 %v114
  %v116 = vpop.xlane.xlu0 %115
  %v117 = vlaneseq
  %v118 = vshrl.u32 %v117, 7
  %v119 = vsub.s32 0, %v118
  %v120 = vrot.slane %v18, %v119
  %v121 = vadd.f32 %v116, %v120
  %vm122 = vcmask 7168
  %123 = vst.msk [vmem:[%s3] sm:$0xff] %vm122, %v121
  // Predicated region
  $region14: #{qfunc_forward.1} parent=0 // pred_check
    _
  $region15: #{qfunc_forward.1} parent=0 // pred_check_branch
    %125 = sbr.rel (0) target = $region17
  $region16: #{qfunc_forward.1} parent=0 // pred_region
    _
  $region17: #{qfunc_forward.1} parent=0 // pred_fallthru
    _
  // Predicated region
  $region18: #{qfunc_forward.1} parent=0 // pred_check
    _
  $region19: #{qfunc_forward.1} parent=0 // pred_check_branch
    %127 = sbr.rel (0) target = $region21
  $region20: #{qfunc_forward.1} parent=0 // pred_region
    _
  $region21: #{qfunc_forward.1} parent=0 // pred_fallthru
    _

</llo_original>
